<compile_context>
chip_gen: v7x
topology: tpu7x:2x2x1
jax: 0.10.0
libtpu: 0.0.40
codegen_flags: <defaults>
</compile_context>

<pallas_src>
import functools

import jax
import jax.numpy as jnp
from jax.experimental import pallas as pl
from jax.experimental.pallas import tpu as pltpu


def _round_up(x, m):
    return ((x + m - 1) // m) * m


def _mlp_kernel(x_ref, w1_ref, bias_ref, w2_ref, w3_ref, o_ref, *, h_pad, e_pad):
    """One batch-tile of the 2-hidden-layer ReLU MLP.

    Weights/activations are bf16 (or f32); all three matmuls run on the MXU with f32
    accumulation. Bias adds and ReLU stay in f32 (v5e VPU has no bf16 path).
    """
    bias = bias_ref[...]                    # (3, maxd) f32, loaded once per tile
    b1 = bias[0:1, :h_pad]
    b2 = bias[1:2, :h_pad]
    b3 = bias[2:3, :e_pad]

    # Layer 1: x @ W1 + b1   (x already = cat([beliefs, actions], -1))
    h = jnp.dot(x_ref[...], w1_ref[...], preferred_element_type=jnp.float32)
    h = jnp.maximum(h + b1, 0.0)

    # Layer 2
    h = h.astype(w2_ref.dtype)
    h = jnp.maximum(
        jnp.dot(h, w2_ref[...], preferred_element_type=jnp.float32) + b2, 0.0)

    # Output head
    h = h.astype(w3_ref.dtype)
    out = jnp.dot(h, w3_ref[...], preferred_element_type=jnp.float32) + b3
    o_ref[...] = out.astype(o_ref.dtype)


def init_one_step_predictor_params(key, belief_size, action_size, hidden_size,
                                   embedding_size, dtype=jnp.float32):
    """Deterministic init mimicking torch.nn.Linear default U(-1/sqrt(fan_in), ...)."""
    in_size = belief_size + action_size
    ks = jax.random.split(key, 6)

    def lin(kw, kb, fan_in, fan_out):
        bound = 1.0 / jnp.sqrt(jnp.asarray(fan_in, jnp.float32))
        w = jax.random.uniform(kw, (fan_in, fan_out), dtype, -bound, bound)
        b = jax.random.uniform(kb, (1, fan_out), dtype, -bound, bound)
        return w, b

    w1, b1 = lin(ks[0], ks[1], in_size, hidden_size)
    w2, b2 = lin(ks[2], ks[3], hidden_size, hidden_size)
    w3, b3 = lin(ks[4], ks[5], hidden_size, embedding_size)
    return dict(w1=w1, b1=b1, w2=w2, b2=b2, w3=w3, b3=b3)


def prepare_one_step_predictor_params(params, compute_dtype=jnp.bfloat16):
    """One-time packing for the kernel:
      - zero-pad hidden & embedding dims to multiples of 128 (lane-dense tiles),
      - cast weights to the MXU compute dtype (bf16 by default),
      - pack the three biases into one (3, maxd) f32 array (fewer kernel inputs).
    Zero padding is exact: padded hidden units get zero pre-activations and zero
    outgoing weights; padded output columns are identically zero and sliced off.
    """
    w1, b1 = params["w1"], params["b1"]
    w2, b2 = params["w2"], params["b2"]
    w3, b3 = params["w3"], params["b3"]
    in_size, hidden = w1.shape
    emb = w3.shape[1]
    h_pad = _round_up(hidden, 128)
    e_pad = _round_up(emb, 128)
    maxd = max(h_pad, e_pad)

    def pad2(a, rows, cols):
        return jnp.pad(a, ((0, rows - a.shape[0]), (0, cols - a.shape[1])))

    bias = jnp.zeros((3, maxd), jnp.float32)
    bias = bias.at[0, :hidden].set(b1.reshape(-1).astype(jnp.float32))
    bias = bias.at[1, :hidden].set(b2.reshape(-1).astype(jnp.float32))
    bias = bias.at[2, :emb].set(b3.reshape(-1).astype(jnp.float32))

    return dict(
        w1=pad2(w1, in_size, h_pad).astype(compute_dtype),
        w2=pad2(w2, h_pad, h_pad).astype(compute_dtype),
        w3=pad2(w3, h_pad, e_pad).astype(compute_dtype),
        bias=bias,
        emb=emb,
    )


def one_step_predictor_forward(packed, *inputs, tile_b=2048, out_dtype=jnp.bfloat16):
    """Matches OneStepPredictor.forward(*params): (beliefs, actions) or
    (beliefs, states, actions) — states are ignored."""
    if len(inputs) == 2:
        beliefs, actions = inputs
    else:
        beliefs, _states, actions = inputs

    lead_shape = beliefs.shape[:-1]
    db = beliefs.shape[-1]
    da = actions.shape[-1]
    compute_dtype = packed["w1"].dtype

    # Fuse the torch.cat in the wrapper (tiny: B*(db+da)*2 bytes) so layer 1 is a
    # single K=(db+da) MXU matmul instead of two half-K matmuls + a VPU add.
    x = jnp.concatenate(
        [beliefs.reshape(-1, db), actions.reshape(-1, da)], axis=-1
    ).astype(compute_dtype)
    B, d_in = x.shape

    h_pad = packed["w2"].shape[0]
    e_pad = packed["w3"].shape[1]
    emb = packed["emb"]

    # Batch tile: large (amortize ~0.35us/step pipeline overhead), 16-aligned for
    # bf16 sublane packing, and capped at ceil(B/2) so batches bigger than one tile
    # always produce >=2 grid steps (lets the "parallel" axis use both v7x TCs).
    tb = min(_round_up(tile_b, 16), _round_up((B + 1) // 2, 16))
    tb = max(tb, 16)
    Bp = _round_up(B, tb)
    if Bp != B:
        x = jnp.pad(x, ((0, Bp - B), (0, 0)))

    flops = 2 * Bp * (d_in * h_pad + h_pad * h_pad + h_pad * e_pad)
    bytes_accessed = int(
        Bp * d_in * x.dtype.itemsize
        + sum(packed[k].size * packed[k].dtype.itemsize
              for k in ("w1", "w2", "w3", "bias"))
        + Bp * e_pad * jnp.dtype(out_dtype).itemsize)

    full = lambda arr: pl.BlockSpec(arr.shape, lambda i: (0, 0))

    out = pl.pallas_call(
        functools.partial(_mlp_kernel, h_pad=h_pad, e_pad=e_pad),
        out_shape=jax.ShapeDtypeStruct((Bp, e_pad), out_dtype),  # bf16: halves HBM writeback
        grid=(Bp // tb,),
        in_specs=[
            pl.BlockSpec((tb, d_in), lambda i: (i, 0)),   # fused [beliefs|actions] tile
            full(packed["w1"]),
            full(packed["bias"]),
            full(packed["w2"]),
            full(packed["w3"]),
        ],
        out_specs=pl.BlockSpec((tb, e_pad), lambda i: (i, 0)),   # lane-dense output
        compiler_params=pltpu.CompilerParams(
            dimension_semantics=("parallel",)),  # batch axis shards across v7x's 2 TCs
        cost_estimate=pl.CostEstimate(
            flops=flops, transcendentals=0, bytes_accessed=bytes_accessed),
    )(x, packed["w1"], packed["bias"], packed["w2"], packed["w3"])

    # Strip padding only when padding actually happened (avoid a pure-overhead
    # read+rewrite of the output when B and emb are already aligned).
    if Bp != B or e_pad != emb:
        out = out[:B, :emb]
    return out.reshape(*lead_shape, emb)


def _reference_forward(params, beliefs, actions, compute_dtype=jnp.bfloat16):
    """Reference matching the kernel's numerics: bf16-rounded operands, f32 accumulation."""
    def q(a):
        return a.astype(compute_dtype).astype(jnp.float32)

    x = q(jnp.concatenate([beliefs, actions], axis=-1))
    h = jnp.maximum(x @ q(params["w1"]) + params["b1"].astype(jnp.float32), 0.0)
    h = jnp.maximum(q(h) @ q(params["w2"]) + params["b2"].astype(jnp.float32), 0.0)
    return q(h) @ q(params["w3"]) + params["b3"].astype(jnp.float32)


if __name__ == "__main__":
    belief_size = 24
    action_size = 8
    hidden_size = 32
    embedding_size = 32
    batch = 8

    key = jax.random.PRNGKey(0)
    k_params, k_bel, k_act = jax.random.split(key, 3)

    params = init_one_step_predictor_params(
        k_params, belief_size, action_size, hidden_size, embedding_size)
    packed = prepare_one_step_predictor_params(params)

    beliefs = jax.random.normal(k_bel, (batch, belief_size), jnp.float32)
    actions = jax.random.normal(k_act, (batch, action_size), jnp.float32)

    out = one_step_predictor_forward(packed, beliefs, actions)
    out = jax.block_until_ready(out)

    ref = _reference_forward(params, beliefs, actions)
    assert out.shape == (batch, embedding_size)
    # bf16 output rounding on top of bf16-operand matmuls -> loose-ish tolerance.
    assert jnp.allclose(out.astype(jnp.float32), ref, atol=2e-2, rtol=2e-2), \
        "mismatch vs reference"

    print("KERNEL_OK")
</pallas_src>

<mosaic_0001>
module attributes {stable_mosaic.version = 11 : i64} {
  func.func @_mlp_kernel(%arg0: i32, %arg1: memref<16x32xbf16, #tpu.memory_space<vmem>>, %arg2: memref<32x128xbf16, #tpu.memory_space<vmem>>, %arg3: memref<3x128xf32, #tpu.memory_space<vmem>>, %arg4: memref<128x128xbf16, #tpu.memory_space<vmem>>, %arg5: memref<128x128xbf16, #tpu.memory_space<vmem>>, %arg6: memref<16x128xbf16, #tpu.memory_space<vmem>>) attributes {dimension_semantics = [#tpu.dimension_semantics<parallel>], iteration_bounds = array<i64: 1>, scalar_prefetch = 0 : i64, scratch_operands = 0 : i64, tpu.core_type = #tpu.core_type<tc>, window_params = [{transform_indices = @transform_0, window_bounds = array<i64: 16, 32>}, {pipeline_mode = #tpu.pipeline_mode<synchronous>, transform_indices = @transform_1, window_bounds = array<i64: 32, 128>}, {pipeline_mode = #tpu.pipeline_mode<synchronous>, transform_indices = @transform_2, window_bounds = array<i64: 3, 128>}, {pipeline_mode = #tpu.pipeline_mode<synchronous>, transform_indices = @transform_3, window_bounds = array<i64: 128, 128>}, {pipeline_mode = #tpu.pipeline_mode<synchronous>, transform_indices = @transform_4, window_bounds = array<i64: 128, 128>}, {transform_indices = @transform_5, window_bounds = array<i64: 16, 128>}]} {
    %c0 = arith.constant 0 : index
    %c0_0 = arith.constant 0 : index
    %0 = vector.load %arg3[%c0, %c0_0] : memref<3x128xf32, #tpu.memory_space<vmem>>, vector<3x128xf32>
    %1 = vector.extract_strided_slice %0 {offsets = [0, 0], sizes = [1, 128], strides = [1, 1]} : vector<3x128xf32> to vector<1x128xf32>
    %2 = vector.extract_strided_slice %0 {offsets = [1, 0], sizes = [1, 128], strides = [1, 1]} : vector<3x128xf32> to vector<1x128xf32>
    %3 = vector.extract_strided_slice %0 {offsets = [2, 0], sizes = [1, 128], strides = [1, 1]} : vector<3x128xf32> to vector<1x128xf32>
    %c0_1 = arith.constant 0 : index
    %c0_2 = arith.constant 0 : index
    %4 = vector.load %arg1[%c0_1, %c0_2] : memref<16x32xbf16, #tpu.memory_space<vmem>>, vector<16x32xbf16>
    %c0_3 = arith.constant 0 : index
    %c0_4 = arith.constant 0 : index
    %5 = vector.load %arg2[%c0_3, %c0_4] : memref<32x128xbf16, #tpu.memory_space<vmem>>, vector<32x128xbf16>
    %cst = arith.constant dense<0.000000e+00> : vector<16x128xf32>
    %6 = tpu.matmul %4, %5, %cst {dimension_numbers = #tpu.dot_dimension_numbers<[1], [0], [0], [1], [0, 0, 1, 1], [], []>} : vector<16x32xbf16>, vector<32x128xbf16>, vector<16x128xf32> -> vector<16x128xf32>
    %7 = vector.broadcast %1 : vector<1x128xf32> to vector<16x128xf32>
    %8 = arith.addf %6, %7 : vector<16x128xf32>
    %cst_5 = arith.constant 0.000000e+00 : f32
    %9 = vector.broadcast %cst_5 : f32 to vector<16x128xf32>
    %10 = arith.maximumf %8, %9 : vector<16x128xf32>
    %11 = arith.truncf %10 : vector<16x128xf32> to vector<16x128xbf16>
    %c0_6 = arith.constant 0 : index
    %c0_7 = arith.constant 0 : index
    %12 = vector.load %arg4[%c0_6, %c0_7] : memref<128x128xbf16, #tpu.memory_space<vmem>>, vector<128x128xbf16>
    %cst_8 = arith.constant dense<0.000000e+00> : vector<16x128xf32>
    %13 = tpu.matmul %11, %12, %cst_8 {dimension_numbers = #tpu.dot_dimension_numbers<[1], [0], [0], [1], [0, 0, 1, 1], [], []>} : vector<16x128xbf16>, vector<128x128xbf16>, vector<16x128xf32> -> vector<16x128xf32>
    %14 = vector.broadcast %2 : vector<1x128xf32> to vector<16x128xf32>
    %15 = arith.addf %13, %14 : vector<16x128xf32>
    %cst_9 = arith.constant 0.000000e+00 : f32
    %16 = vector.broadcast %cst_9 : f32 to vector<16x128xf32>
    %17 = arith.maximumf %15, %16 : vector<16x128xf32>
    %18 = arith.truncf %17 : vector<16x128xf32> to vector<16x128xbf16>
    %c0_10 = arith.constant 0 : index
    %c0_11 = arith.constant 0 : index
    %19 = vector.load %arg5[%c0_10, %c0_11] : memref<128x128xbf16, #tpu.memory_space<vmem>>, vector<128x128xbf16>
    %cst_12 = arith.constant dense<0.000000e+00> : vector<16x128xf32>
    %20 = tpu.matmul %18, %19, %cst_12 {dimension_numbers = #tpu.dot_dimension_numbers<[1], [0], [0], [1], [0, 0, 1, 1], [], []>} : vector<16x128xbf16>, vector<128x128xbf16>, vector<16x128xf32> -> vector<16x128xf32>
    %21 = vector.broadcast %3 : vector<1x128xf32> to vector<16x128xf32>
    %22 = arith.addf %20, %21 : vector<16x128xf32>
    %23 = arith.truncf %22 : vector<16x128xf32> to vector<16x128xbf16>
    %c0_13 = arith.constant 0 : index
    %c0_14 = arith.constant 0 : index
    %24 = vector.load %arg6[%c0_13, %c0_14] : memref<16x128xbf16, #tpu.memory_space<vmem>>, vector<16x128xbf16>
    tpu.vector_store %arg6[%c0_13, %c0_14], %23 {strides = array<i32>} : memref<16x128xbf16, #tpu.memory_space<vmem>>, vector<16x128xbf16>,
    return
  }
  func.func @transform_0(%arg0: i32) -> (i32, i32) {
    %c0_i32 = arith.constant 0 : i32
    %c0_i32_0 = arith.constant 0 : i32
    return %arg0, %c0_i32 : i32, i32
  }
  func.func @transform_1(%arg0: i32) -> (i32, i32) {
    %c0_i32 = arith.constant 0 : i32
    %c0_i32_0 = arith.constant 0 : i32
    %c0_i32_1 = arith.constant 0 : i32
    return %c0_i32, %c0_i32_0 : i32, i32
  }
  func.func @transform_2(%arg0: i32) -> (i32, i32) {
    %c0_i32 = arith.constant 0 : i32
    %c0_i32_0 = arith.constant 0 : i32
    %c0_i32_1 = arith.constant 0 : i32
    return %c0_i32, %c0_i32_0 : i32, i32
  }
  func.func @transform_3(%arg0: i32) -> (i32, i32) {
    %c0_i32 = arith.constant 0 : i32
    %c0_i32_0 = arith.constant 0 : i32
    %c0_i32_1 = arith.constant 0 : i32
    return %c0_i32, %c0_i32_0 : i32, i32
  }
  func.func @transform_4(%arg0: i32) -> (i32, i32) {
    %c0_i32 = arith.constant 0 : i32
    %c0_i32_0 = arith.constant 0 : i32
    %c0_i32_1 = arith.constant 0 : i32
    return %c0_i32, %c0_i32_0 : i32, i32
  }
  func.func @transform_5(%arg0: i32) -> (i32, i32) {
    %c0_i32 = arith.constant 0 : i32
    %c0_i32_0 = arith.constant 0 : i32
    return %arg0, %c0_i32 : i32, i32
  }
}

</mosaic_0001>

<llo_original>
// kernel: tpu_custom_call.1
$region0: #{tpu_custom_call.1}
  #allocation0 [shape = 'u32[]', space=smem, size = 0x4, offset = 0x4, fixed_abs, tag = 'smem constant byte address 0x4 - core index']
  #allocation1 [shape = 'u32[144,128]{1,0:T(1,128)}', space=vmem, size = 0x12000, scoped, tag = 'internal scratch']
  %s0 = inlined_call_operand.hbm [shape: bf16[16,32], index: 0, kind: input, shape index: {}]
  %s1 = inlined_call_operand.hbm [shape: bf16[32,128], index: 1, kind: input, shape index: {}]
  %s2 = inlined_call_operand.vmem [shape: f32[3,128], index: 2, kind: input, shape index: {}]
  %s3 = inlined_call_operand.hbm [shape: bf16[128,128], index: 3, kind: input, shape index: {}]
  %s4 = inlined_call_operand.hbm [shape: bf16[128,128], index: 4, kind: input, shape index: {}]
  %s5 = inlined_call_operand.hbm [shape: bf16[16,128], index: 5, kind: output, shape index: {}]
  %s6 = sld [smem:[#allocation0]]
  $region46: #{tpu_custom_call.1} parent=0
    _
  %s8 = ssub.s32 1, %s6
  %s9 = scalar_select 0, %s8, %s6
  $region1: #{tpu_custom_call.1} parent=0
    #allocation2 [shape = 'u8[4096]{0}', space=vmem, size = 0x1000, scoped, tag = 'input window, operand 0, single buffered']
    #allocation3 [shape = 's32[1]{0}', space=sflag, size = 0x4, scoped, tag = 'scoped memory for tpu_custom_call.1']
    #allocation4 [shape = 's32[1]{0}', space=sflag, size = 0x4, scoped, tag = 'scoped memory for tpu_custom_call.1']
    #allocation5 [shape = 'u8[8192]{0}', space=vmem, size = 0x2000, scoped, tag = 'input window, operand 1, single buffered']
    #allocation6 [shape = 's32[1]{0}', space=sflag, size = 0x4, scoped, tag = 'scoped memory for tpu_custom_call.1']
    #allocation7 [shape = 'u8[32768]{0}', space=vmem, size = 0x8000, scoped, tag = 'input window, operand 3, single buffered']
    #allocation8 [shape = 'u8[32768]{0}', space=vmem, size = 0x8000, scoped, tag = 'input window, operand 4, single buffered']
    #allocation9 [shape = 's32[1]{0}', space=sflag, size = 0x4, scoped, tag = 'scoped memory for tpu_custom_call.1']
    #allocation10 [shape = 'u8[4096]{0}', space=vmem, size = 0x1000, scoped, tag = 'output window, operand 0, single buffered']
    %10 = vsyncpa [#allocation3], 0
    %11 = vsyncpa [#allocation6], 0
    %12 = vsyncpa [#allocation9], 0
    %13 = vsyncpa [#allocation4], 0
    // Predicated region
    $region2: #{tpu_custom_call.1} parent=1 // pred_check
      _
    $region3: #{tpu_custom_call.1} parent=1 // pred_check_branch
      %15 = sbr.rel (0) target = $region5
    $region4: #{tpu_custom_call.1} parent=1 // pred_region
      %s17 = ssub.s32 128, 128
      %18 = vsyncadd [#allocation3], %s17
      %s19 = sshll.u32 [#allocation2], 4
      %s20 = int_to_ptr.vmem [resolvable:$true] %s19
      %25 = dma.hbm_to_vmem [thread:$0]  %s0, 128, %s20, [#allocation3], 64, 64, 4
    $region5: #{tpu_custom_call.1} parent=1 // pred_fallthru
      _
    // Predicated region
    $region6: #{tpu_custom_call.1} parent=1 // pred_check
      _
    $region7: #{tpu_custom_call.1} parent=1 // pred_check_branch
      %27 = sbr.rel (0) target = $region9
    $region8: #{tpu_custom_call.1} parent=1 // pred_region
      %s29 = ssub.s32 256, 256
      %30 = vsyncadd [#allocation6], %s29
      %s31 = sshll.u32 [#allocation5], 4
      %s32 = int_to_ptr.vmem [resolvable:$true] %s31
      %37 = dma.hbm_to_vmem [thread:$0]  %s1, 256, %s32, [#allocation6], 64, 64, 4
    $region9: #{tpu_custom_call.1} parent=1 // pred_fallthru
      _
    // Predicated region
    $region10: #{tpu_custom_call.1} parent=1 // pred_check
      _
    $region11: #{tpu_custom_call.1} parent=1 // pred_check_branch
      %39 = sbr.rel (0) target = $region13
    $region12: #{tpu_custom_call.1} parent=1 // pred_region
      _
    $region13: #{tpu_custom_call.1} parent=1 // pred_fallthru
      _
    // Predicated region
    $region14: #{tpu_custom_call.1} parent=1 // pred_check
      _
    $region15: #{tpu_custom_call.1} parent=1 // pred_check_branch
      %41 = sbr.rel (0) target = $region17
    $region16: #{tpu_custom_call.1} parent=1 // pred_region
      %s43 = ssub.s32 1024, 1024
      %44 = vsyncadd [#allocation6], %s43
      %s45 = sshll.u32 [#allocation7], 4
      %s46 = int_to_ptr.vmem [resolvable:$true] %s45
      %51 = dma.hbm_to_vmem [thread:$0]  %s3, 1024, %s46, [#allocation6], 64, 64, 4
    $region17: #{tpu_custom_call.1} parent=1 // pred_fallthru
      _
    // Predicated region
    $region18: #{tpu_custom_call.1} parent=1 // pred_check
      _
    $region19: #{tpu_custom_call.1} parent=1 // pred_check_branch
      %53 = sbr.rel (0) target = $region21
    $region20: #{tpu_custom_call.1} parent=1 // pred_region
      %s55 = ssub.s32 1024, 1024
      %56 = vsyncadd [#allocation9], %s55
      %s57 = sshll.u32 [#allocation8], 4
      %s58 = int_to_ptr.vmem [resolvable:$true] %s57
      %63 = dma.hbm_to_vmem [thread:$0]  %s4, 1024, %s58, [#allocation9], 64, 64, 4
    $region21: #{tpu_custom_call.1} parent=1 // pred_fallthru
      _
    // Predicated region
    $region22: #{tpu_custom_call.1} parent=1 // pred_check
      _
    $region23: #{tpu_custom_call.1} parent=1 // pred_check_branch
      %65 = sbr.rel (0) target = $region25
    $region24: #{tpu_custom_call.1} parent=1 // pred_region
      %66 = dma.done [#allocation3], 128
    $region25: #{tpu_custom_call.1} parent=1 // pred_fallthru
      _
    // Predicated region
    $region26: #{tpu_custom_call.1} parent=1 // pred_check
      _
    $region27: #{tpu_custom_call.1} parent=1 // pred_check_branch
      %68 = sbr.rel (0) target = $region29
    $region28: #{tpu_custom_call.1} parent=1 // pred_region
      %69 = dma.done [#allocation6], 256
    $region29: #{tpu_custom_call.1} parent=1 // pred_fallthru
      _
    // Predicated region
    $region30: #{tpu_custom_call.1} parent=1 // pred_check
      _
    $region31: #{tpu_custom_call.1} parent=1 // pred_check_branch
      %71 = sbr.rel (0) target = $region33
    $region32: #{tpu_custom_call.1} parent=1 // pred_region
      %72 = dma.done [#allocation6], 1024
    $region33: #{tpu_custom_call.1} parent=1 // pred_fallthru
      _
    // Predicated region
    $region34: #{tpu_custom_call.1} parent=1 // pred_check
      _
    $region35: #{tpu_custom_call.1} parent=1 // pred_check_branch
      %74 = sbr.rel (0) target = $region37
    $region36: #{tpu_custom_call.1} parent=1 // pred_region
      %75 = dma.done [#allocation9], 1024
    $region37: #{tpu_custom_call.1} parent=1 // pred_fallthru
      _
    %v77 = vld [vmem:[%s2] sm:$0x7]
    %v78 = vld [vmem:[#allocation2] sm:$0xf]
    %v79 = vld [vmem:[#allocation2 + $0x4] sm:$0xf]
    %v80 = vld [vmem:[#allocation5] sm:$0xf]
    %v81 = vld [vmem:[#allocation5 + $0x4] sm:$0xf]
    %v82 = vld [vmem:[#allocation5 + $0x8] sm:$0xf]
    %v83 = vld [vmem:[#allocation5 + $0xc] sm:$0xf]
    %v84 = vlaneseq
    %v85 = vshrl.u32 %v84, 7
    %v86 = vsub.s32 0, %v85
    %v87 = vrot.slane %v77, %v86
    %v90 = vunpack.c.l.b16 %v78
    %v91 = vunpack.c.l.b16 %v79
    %v92 = vpack.c.b16 %v91, %v90
    %v97 = vunpack.c.l.b16 %v80
    %v98 = vunpack.c.l.b16 %v81
    %v99 = vunpack.c.l.b16 %v82
    %v100 = vunpack.c.l.b16 %v83
    %v101 = vpack.c.b16 %v98, %v97
    %v102 = vpack.c.b16 %v100, %v99
    %vm105 = vcmask 261120
    %v107 = vsel %vm105, %v92, 0
    %109 = vmatprep.subr.bf16.mxu0 0
    %110 = vmatpush1.bf16.msra.mxu0 %v101
    %111 = vmatprep.subr.bf16.mxu0 0
    %112 = vmatpush1.bf16.msra.mxu0 %v102
    %113 = vmatprep.subr.bf16.mxu0 0
    %114 = vmatpush1.bf16.msra.mxu0 0
    %115 = vmatprep.subr.bf16.mxu0 0
    %116 = vmatpush1.bf16.msra.mxu0 0
    %117 = vmatprep.subr.bf16.mxu0 0
    %118 = vmatpush1.bf16.msra.mxu0 0
    %119 = vmatprep.subr.bf16.mxu0 0
    %120 = vmatpush1.bf16.msra.mxu0 0
    %121 = vmatprep.subr.bf16.mxu0 0
    %122 = vmatpush1.bf16.msra.mxu0 0
    %123 = vmatprep.subr.bf16.mxu0 0
    %124 = vmatpush1.bf16.msra.mxu0 0
    %125 = vmatprep.subr.bf16.mxu0 0
    %126 = vmatpush1.bf16.msra.mxu0 0
    %127 = vmatprep.subr.bf16.mxu0 0
    %128 = vmatpush1.bf16.msra.mxu0 0
    %129 = vmatprep.subr.bf16.mxu0 0
    %130 = vmatpush1.bf16.msra.mxu0 0
    %131 = vmatprep.subr.bf16.mxu0 0
    %132 = vmatpush1.bf16.msra.mxu0 0
    %133 = vmatprep.subr.bf16.mxu0 0
    %134 = vmatpush1.bf16.msra.mxu0 0
    %135 = vmatprep.subr.bf16.mxu0 0
    %136 = vmatpush1.bf16.msra.mxu0 0
    %137 = vmatprep.subr.bf16.mxu0 0
    %138 = vmatpush1.bf16.msra.mxu0 0
    %139 = vmatprep.subr.bf16.mxu0 0
    %140 = vmatpush1.bf16.msra.mxu0 0
    %141 = vmatprep.mubr.bf16.mxu0 0
    %142 = vmatmul.mubr.bf16.gmra.mrb[0].mxu0 %v107
    %v143 = vpop.f32.mrb[0].mxu0
    %v144 = vadd.f32 %v87, %v143
    %v145 = vpop.f32.mrb[0].mxu0
    %v146 = vpop.f32.mrb[0].mxu0
    %v147 = vadd.f32 %v87, %v146
    %v148 = vpop.f32.mrb[0].mxu0
    %149 = vdwg.mxu0
    %v150 = vmax.f32 %v144, 0.0
    %v151 = vmax.f32 %v147, 0.0
    %v152 = vpack.c.bf16 %v151, %v150
    %v153 = vld [vmem:[#allocation7] sm:$0xf]
    %v154 = vld [vmem:[#allocation7 + $0x4] sm:$0xf]
    %v155 = vld [vmem:[#allocation7 + $0x8] sm:$0xf]
    %v156 = vld [vmem:[#allocation7 + $0xc] sm:$0xf]
    %v157 = vld [vmem:[#allocation7 + $0x10] sm:$0xf]
    %v158 = vld [vmem:[#allocation7 + $0x14] sm:$0xf]
    %v159 = vld [vmem:[#allocation7 + $0x18] sm:$0xf]
    %v160 = vld [vmem:[#allocation7 + $0x1c] sm:$0xf]
    %v161 = vld [vmem:[#allocation7 + $0x20] sm:$0xf]
    %v162 = vld [vmem:[#allocation7 + $0x24] sm:$0xf]
    %v163 = vld [vmem:[#allocation7 + $0x28] sm:$0xf]
    %v164 = vld [vmem:[#allocation7 + $0x2c] sm:$0xf]
    %v165 = vld [vmem:[#allocation7 + $0x30] sm:$0xf]
    %v166 = vld [vmem:[#allocation7 + $0x34] sm:$0xf]
    %v167 = vld [vmem:[#allocation7 + $0x38] sm:$0xf]
    %v168 = vld [vmem:[#allocation7 + $0x3c] sm:$0xf]
    %v169 = vlaneseq
    %v170 = vshrl.u32 %v169, 7
    %v171 = vsub.s32 1, %v170
    %v172 = vrot.slane %v77, %v171
    %v189 = vunpack.c.l.b16 %v153
    %v190 = vunpack.c.l.b16 %v154
    %v191 = vunpack.c.l.b16 %v155
    %v192 = vunpack.c.l.b16 %v156
    %v193 = vunpack.c.l.b16 %v157
    %v194 = vunpack.c.l.b16 %v158
    %v195 = vunpack.c.l.b16 %v159
    %v196 = vunpack.c.l.b16 %v160
    %v197 = vunpack.c.l.b16 %v161
    %v198 = vunpack.c.l.b16 %v162
    %v199 = vunpack.c.l.b16 %v163
    %v200 = vunpack.c.l.b16 %v164
    %v201 = vunpack.c.l.b16 %v165
    %v202 = vunpack.c.l.b16 %v166
    %v203 = vunpack.c.l.b16 %v167
    %v204 = vunpack.c.l.b16 %v168
    %v205 = vpack.c.b16 %v190, %v189
    %v206 = vpack.c.b16 %v192, %v191
    %v207 = vpack.c.b16 %v194, %v193
    %v208 = vpack.c.b16 %v196, %v195
    %v209 = vpack.c.b16 %v198, %v197
    %v210 = vpack.c.b16 %v200, %v199
    %v211 = vpack.c.b16 %v202, %v201
    %v212 = vpack.c.b16 %v204, %v203
    %221 = vmatprep.subr.bf16.mxu0 0
    %222 = vmatpush1.bf16.msra.mxu0 %v205
    %223 = vmatprep.subr.bf16.mxu0 0
    %224 = vmatpush1.bf16.msra.mxu0 %v206
    %225 = vmatprep.subr.bf16.mxu0 0
    %226 = vmatpush1.bf16.msra.mxu0 %v207
    %227 = vmatprep.subr.bf16.mxu0 0
    %228 = vmatpush1.bf16.msra.mxu0 %v208
    %229 = vmatprep.subr.bf16.mxu0 0
    %230 = vmatpush1.bf16.msra.mxu0 %v209
    %231 = vmatprep.subr.bf16.mxu0 0
    %232 = vmatpush1.bf16.msra.mxu0 %v210
    %233 = vmatprep.subr.bf16.mxu0 0
    %234 = vmatpush1.bf16.msra.mxu0 %v211
    %235 = vmatprep.subr.bf16.mxu0 0
    %236 = vmatpush1.bf16.msra.mxu0 %v212
    %237 = vmatprep.subr.bf16.mxu0 0
    %238 = vmatpush1.bf16.msra.mxu0 0
    %239 = vmatprep.subr.bf16.mxu0 0
    %240 = vmatpush1.bf16.msra.mxu0 0
    %241 = vmatprep.subr.bf16.mxu0 0
    %242 = vmatpush1.bf16.msra.mxu0 0
    %243 = vmatprep.subr.bf16.mxu0 0
    %244 = vmatpush1.bf16.msra.mxu0 0
    %245 = vmatprep.subr.bf16.mxu0 0
    %246 = vmatpush1.bf16.msra.mxu0 0
    %247 = vmatprep.subr.bf16.mxu0 0
    %248 = vmatpush1.bf16.msra.mxu0 0
    %249 = vmatprep.subr.bf16.mxu0 0
    %250 = vmatpush1.bf16.msra.mxu0 0
    %251 = vmatprep.subr.bf16.mxu0 0
    %252 = vmatpush1.bf16.msra.mxu0 0
    %253 = vmatprep.mubr.bf16.mxu0 0
    %254 = vmatmul.mubr.bf16.gmra.mrb[0].mxu0 %v152
    %v255 = vpop.f32.mrb[0].mxu0
    %v256 = vadd.f32 %v172, %v255
    %v257 = vpop.f32.mrb[0].mxu0
    %v258 = vpop.f32.mrb[0].mxu0
    %v259 = vadd.f32 %v172, %v258
    %v260 = vpop.f32.mrb[0].mxu0
    %261 = vdwg.mxu0
    %v262 = vmax.f32 %v256, 0.0
    %v263 = vmax.f32 %v259, 0.0
    %v264 = vpack.c.bf16 %v263, %v262
    %v265 = vld [vmem:[#allocation8] sm:$0xf]
    %v266 = vld [vmem:[#allocation8 + $0x4] sm:$0xf]
    %v267 = vld [vmem:[#allocation8 + $0x8] sm:$0xf]
    %v268 = vld [vmem:[#allocation8 + $0xc] sm:$0xf]
    %v269 = vld [vmem:[#allocation8 + $0x10] sm:$0xf]
    %v270 = vld [vmem:[#allocation8 + $0x14] sm:$0xf]
    %v271 = vld [vmem:[#allocation8 + $0x18] sm:$0xf]
    %v272 = vld [vmem:[#allocation8 + $0x1c] sm:$0xf]
    %v273 = vld [vmem:[#allocation8 + $0x20] sm:$0xf]
    %v274 = vld [vmem:[#allocation8 + $0x24] sm:$0xf]
    %v275 = vld [vmem:[#allocation8 + $0x28] sm:$0xf]
    %v276 = vld [vmem:[#allocation8 + $0x2c] sm:$0xf]
    %v277 = vld [vmem:[#allocation8 + $0x30] sm:$0xf]
    %v278 = vld [vmem:[#allocation8 + $0x34] sm:$0xf]
    %v279 = vld [vmem:[#allocation8 + $0x38] sm:$0xf]
    %v280 = vld [vmem:[#allocation8 + $0x3c] sm:$0xf]
    %v281 = vlaneseq
    %v282 = vshrl.u32 %v281, 7
    %v283 = vsub.s32 2, %v282
    %v284 = vrot.slane %v77, %v283
    %v301 = vunpack.c.l.b16 %v265
    %v302 = vunpack.c.l.b16 %v266
    %v303 = vunpack.c.l.b16 %v267
    %v304 = vunpack.c.l.b16 %v268
    %v305 = vunpack.c.l.b16 %v269
    %v306 = vunpack.c.l.b16 %v270
    %v307 = vunpack.c.l.b16 %v271
    %v308 = vunpack.c.l.b16 %v272
    %v309 = vunpack.c.l.b16 %v273
    %v310 = vunpack.c.l.b16 %v274
    %v311 = vunpack.c.l.b16 %v275
    %v312 = vunpack.c.l.b16 %v276
    %v313 = vunpack.c.l.b16 %v277
    %v314 = vunpack.c.l.b16 %v278
    %v315 = vunpack.c.l.b16 %v279
    %v316 = vunpack.c.l.b16 %v280
    %v317 = vpack.c.b16 %v302, %v301
    %v318 = vpack.c.b16 %v304, %v303
    %v319 = vpack.c.b16 %v306, %v305
    %v320 = vpack.c.b16 %v308, %v307
    %v321 = vpack.c.b16 %v310, %v309
    %v322 = vpack.c.b16 %v312, %v311
    %v323 = vpack.c.b16 %v314, %v313
    %v324 = vpack.c.b16 %v316, %v315
    %333 = vmatprep.subr.bf16.mxu0 0
    %334 = vmatpush1.bf16.msra.mxu0 %v317
    %335 = vmatprep.subr.bf16.mxu0 0
    %336 = vmatpush1.bf16.msra.mxu0 %v318
    %337 = vmatprep.subr.bf16.mxu0 0
    %338 = vmatpush1.bf16.msra.mxu0 %v319
    %339 = vmatprep.subr.bf16.mxu0 0
    %340 = vmatpush1.bf16.msra.mxu0 %v320
    %341 = vmatprep.subr.bf16.mxu0 0
    %342 = vmatpush1.bf16.msra.mxu0 %v321
    %343 = vmatprep.subr.bf16.mxu0 0
    %344 = vmatpush1.bf16.msra.mxu0 %v322
    %345 = vmatprep.subr.bf16.mxu0 0
    %346 = vmatpush1.bf16.msra.mxu0 %v323
    %347 = vmatprep.subr.bf16.mxu0 0
    %348 = vmatpush1.bf16.msra.mxu0 %v324
    %349 = vmatprep.subr.bf16.mxu0 0
    %350 = vmatpush1.bf16.msra.mxu0 0
    %351 = vmatprep.subr.bf16.mxu0 0
    %352 = vmatpush1.bf16.msra.mxu0 0
    %353 = vmatprep.subr.bf16.mxu0 0
    %354 = vmatpush1.bf16.msra.mxu0 0
    %355 = vmatprep.subr.bf16.mxu0 0
    %356 = vmatpush1.bf16.msra.mxu0 0
    %357 = vmatprep.subr.bf16.mxu0 0
    %358 = vmatpush1.bf16.msra.mxu0 0
    %359 = vmatprep.subr.bf16.mxu0 0
    %360 = vmatpush1.bf16.msra.mxu0 0
    %361 = vmatprep.subr.bf16.mxu0 0
    %362 = vmatpush1.bf16.msra.mxu0 0
    %363 = vmatprep.subr.bf16.mxu0 0
    %364 = vmatpush1.bf16.msra.mxu0 0
    %365 = vmatprep.mubr.bf16.mxu0 0
    %366 = vmatmul.mubr.bf16.gmra.mrb[0].mxu0 %v264
    %v367 = vpop.f32.mrb[0].mxu0
    %v368 = vadd.f32 %v284, %v367
    %v369 = vpop.f32.mrb[0].mxu0
    %v370 = vpop.f32.mrb[0].mxu0
    %v371 = vadd.f32 %v284, %v370
    %v372 = vpop.f32.mrb[0].mxu0
    %373 = vdwg.mxu0
    %v374 = vpack.c.bf16 %v371, %v368
    %v376 = vunpack.c.l.b16 %v374
    %v377 = vunpack.c.h.b16 %v374
    %v378 = vpack.c.b16 %v376, %v376
    %v379 = vpack.c.b16 %v377, %v377
    %382 = vst [vmem:[#allocation10] sm:$0xf] %v378
    %383 = vst [vmem:[#allocation10 + $0x4] sm:$0xf] %v379
    // Predicated region
    $region38: #{tpu_custom_call.1} parent=1 // pred_check
      _
    $region39: #{tpu_custom_call.1} parent=1 // pred_check_branch
      %385 = sbr.rel (0) target = $region41
    $region40: #{tpu_custom_call.1} parent=1 // pred_region
      %s387 = ssub.s32 128, 128
      %388 = vsyncadd [#allocation4], %s387
      %s389 = sshll.u32 [#allocation10], 4
      %s390 = int_to_ptr.vmem [resolvable:$true] %s389
      %395 = dma.vmem_to_hbm [thread:$0]  %s390, 128, %s5, [#allocation4], 64, 64, 4
    $region41: #{tpu_custom_call.1} parent=1 // pred_fallthru
      _
    // Predicated region
    $region42: #{tpu_custom_call.1} parent=1 // pred_check
      _
    $region43: #{tpu_custom_call.1} parent=1 // pred_check_branch
      %397 = sbr.rel (0) target = $region45
    $region44: #{tpu_custom_call.1} parent=1 // pred_region
      %398 = dma.done [#allocation4], 128
    $region45: #{tpu_custom_call.1} parent=1 // pred_fallthru
      _
    %399 = vsyncpa [#allocation3], 1
    %400 = vsyncpa [#allocation6], 1
    %401 = vsyncpa [#allocation9], 1
    %402 = vsyncpa [#allocation4], 1

</llo_original>
